<compile_context>
chip_gen: v7x
topology: tpu7x:2x2x1
jax: 0.10.0
libtpu: 0.0.40
codegen_flags: <defaults>
</compile_context>

<pallas_src>
import functools

import jax
import jax.numpy as jnp
from jax.experimental import pallas as pl
from jax.experimental.pallas import tpu as pltpu


# ----------------------------------------------------------------------------
# Kernel bodies
# ----------------------------------------------------------------------------
def _mlp_write(p0, p1, w1_ref, b1_ref, w2_ref, b2_ref, out_ref):
    """relu([p0, p1, p0*p1, p0-p1] @ W1 + b1) @ W2 + b2 -> out_ref.

    W1 is [4H, FP], W2 is [FP, CP] (FP, CP zero-padded to multiples of 128),
    so both matmuls are lane-dense and the first is a single K=4H MXU push.
    """
    feats = jnp.concatenate([p0, p1, p0 * p1, p0 - p1], axis=-1)      # [TB, 4H]
    h = jnp.dot(feats, w1_ref[...], preferred_element_type=jnp.float32)
    h = jnp.maximum(h + b1_ref[...], 0.0)                             # bias+ReLU
    o = jnp.dot(h, w2_ref[...], preferred_element_type=jnp.float32) + b2_ref[...]
    out_ref[...] = o.astype(out_ref.dtype)                            # [TB, CP]


def _head_kernel_mean(x0_ref, x1_ref, w1_ref, b1_ref, w2_ref, b2_ref, out_ref,
                      acc0_ref, acc1_ref, *, seq_len, hidden, pack):
    """Grid = (batch tiles [parallel], packed seq chunks [arbitrary]).

    Inputs are pre-reshaped to [B, L/pack, pack*H] so the streamed sum and the
    accumulators are lane-dense; the pack dim is folded back at finalize.
    """
    k = pl.program_id(1)

    @pl.when(k == 0)
    def _():
        acc0_ref[...] = jnp.zeros_like(acc0_ref)
        acc1_ref[...] = jnp.zeros_like(acc1_ref)

    # Partial sums over this (packed) sequence chunk, f32 accumulation.
    acc0_ref[...] += jnp.sum(x0_ref[...].astype(jnp.float32), axis=1)
    acc1_ref[...] += jnp.sum(x1_ref[...].astype(jnp.float32), axis=1)

    @pl.when(k == pl.num_programs(1) - 1)
    def _():
        inv_l = jnp.float32(1.0 / seq_len)

        def fold(acc):                       # [TB, pack*H] -> [TB, H]
            s = acc[:, 0:hidden]
            for j in range(1, pack):
                s = s + acc[:, j * hidden:(j + 1) * hidden]
            return s

        p0 = fold(acc0_ref[...]) * inv_l
        p1 = fold(acc1_ref[...]) * inv_l
        _mlp_write(p0, p1, w1_ref, b1_ref, w2_ref, b2_ref, out_ref)


def _head_kernel_cls(p0_ref, p1_ref, w1_ref, b1_ref, w2_ref, b2_ref, out_ref):
    """Grid = (batch tiles [parallel],); inputs are the pre-sliced CLS tokens."""
    _mlp_write(p0_ref[...].astype(jnp.float32),
               p1_ref[...].astype(jnp.float32),
               w1_ref, b1_ref, w2_ref, b2_ref, out_ref)


# ----------------------------------------------------------------------------
# Wrapper helpers
# ----------------------------------------------------------------------------
def _round_up(x, m):
    return ((x + m - 1) // m) * m


def _divisor_tile(n, cap, multiple=8):
    """Largest t with t == n, or (t % multiple == 0 and t | n and t <= cap)."""
    if n <= cap:
        return n
    t = (cap // multiple) * multiple
    while t >= multiple:
        if n % t == 0:
            return t
        t -= multiple
    # TODO(synk): non-divisible extents fall back to the full dim (no masking);
    # fine for typical LRA shapes but can blow the VMEM budget for odd sizes.
    return n


def _pick_batch_tile(B, cap=128):
    """Batch tile: multiple of 8 (or full B); >=4 tiles when B is large so the
    'parallel' axis can shard across v7x's two TensorCores."""
    eff_cap = cap
    if B >= 32:
        eff_cap = min(cap, max(8, (B // 4 // 8) * 8))
    return _divisor_tile(B, cap=eff_cap, multiple=8)


# ----------------------------------------------------------------------------
# Wrapper
# ----------------------------------------------------------------------------
def sequence_classification_head_dual(input_0, input_1, w1, b1, w2, b2,
                                      pooling_mode='MEAN',
                                      block_b=None, block_l=None):
    """input_0/input_1: [B, L, H]; w1: [4H, F]; b1: [F]; w2: [F, C]; b2: [C].

    Weights are the PyTorch nn.Linear weights pre-transposed to [in, out].
    """
    B, L, H = input_0.shape
    assert input_1.shape == (B, L, H)
    F = w1.shape[1]
    C = w2.shape[1]
    assert w1.shape[0] == 4 * H
    assert w2.shape[0] == F

    # Zero-pad the MLP widths to lane-dense multiples of 128 (pad columns of
    # W1 / entries of b1, rows+cols of W2, entries of b2). Padded columns pass
    # ReLU as zeros and hit zero rows of W2, so the math is unchanged.
    FP = _round_up(F, 128)
    CP = _round_up(C, 128)
    w1p = jnp.zeros((4 * H, FP), jnp.float32).at[:, :F].set(w1.astype(jnp.float32))
    b1p = jnp.zeros((1, FP), jnp.float32).at[:, :F].set(
        b1.reshape(1, F).astype(jnp.float32))
    w2p = jnp.zeros((FP, CP), jnp.float32).at[:F, :C].set(w2.astype(jnp.float32))
    b2p = jnp.zeros((1, CP), jnp.float32).at[:, :C].set(
        b2.reshape(1, C).astype(jnp.float32))
    weight_bytes = 4 * (4 * H * FP + FP + FP * CP + CP)

    tb = block_b if block_b is not None else _pick_batch_tile(B, cap=128)
    assert B % tb == 0

    itemsize = jnp.dtype(input_0.dtype).itemsize

    if pooling_mode == 'CLS':
        # Only token 0 is needed: slice before the kernel so the other
        # (L-1)/L of the sequence is never streamed from HBM.
        p0_in = input_0[:, 0, :]
        p1_in = input_1[:, 0, :]
        grid = (B // tb,)
        kernel = _head_kernel_cls
        in_specs = [
            pl.BlockSpec((tb, H), lambda i: (i, 0)),
            pl.BlockSpec((tb, H), lambda i: (i, 0)),
            pl.BlockSpec((4 * H, FP), lambda i: (0, 0)),
            pl.BlockSpec((1, FP), lambda i: (0, 0)),
            pl.BlockSpec((FP, CP), lambda i: (0, 0)),
            pl.BlockSpec((1, CP), lambda i: (0, 0)),
        ]
        out_spec = pl.BlockSpec((tb, CP), lambda i: (i, 0))
        scratch = []
        dim_sem = ("parallel",)
        operands = (p0_in, p1_in, w1p, b1p, w2p, b2p)
        footprint = (2 * 2 * tb * H * itemsize      # 2 inputs x double buffer
                     + 2 * weight_bytes             # resident weights/biases
                     + 2 * tb * CP * 4)             # output

    elif pooling_mode == 'MEAN':
        # Lane-dense packing: [B, L, H] -> [B, L/P, P*H] with P*H == 128 when
        # possible (free row-major reshape; the sequence sum is order-invariant
        # so summing packed rows then folding P groups of H lanes is exact).
        if H <= 128 and 128 % H == 0 and L % (128 // H) == 0:
            P = 128 // H
        else:
            P = 1
        Lp, PH = L // P, P * H
        x0 = input_0.reshape(B, Lp, PH)
        x1 = input_1.reshape(B, Lp, PH)

        if block_l is None:
            # ~2 MiB per streamed input block: x2 inputs x2 pipeline buffers
            # stays far under every generation's scoped-VMEM default while the
            # mem-bound reduction is already near the HBM roofline.
            tl_cap = max(8, ((2 * 1024 * 1024) // max(1, tb * PH * itemsize) // 8) * 8)
            tlp = _divisor_tile(Lp, cap=tl_cap, multiple=8)
        else:
            assert block_l % P == 0
            tlp = block_l // P
        assert Lp % tlp == 0

        grid = (B // tb, Lp // tlp)
        kernel = functools.partial(_head_kernel_mean, seq_len=L, hidden=H, pack=P)
        in_specs = [
            pl.BlockSpec((tb, tlp, PH), lambda i, k: (i, k, 0)),
            pl.BlockSpec((tb, tlp, PH), lambda i, k: (i, k, 0)),
            pl.BlockSpec((4 * H, FP), lambda i, k: (0, 0)),
            pl.BlockSpec((1, FP), lambda i, k: (0, 0)),
            pl.BlockSpec((FP, CP), lambda i, k: (0, 0)),
            pl.BlockSpec((1, CP), lambda i, k: (0, 0)),
        ]
        out_spec = pl.BlockSpec((tb, CP), lambda i, k: (i, 0))
        scratch = [pltpu.VMEM((tb, PH), jnp.float32),
                   pltpu.VMEM((tb, PH), jnp.float32)]
        dim_sem = ("parallel", "arbitrary")
        operands = (x0, x1, w1p, b1p, w2p, b2p)
        footprint = (2 * 2 * tb * tlp * PH * itemsize   # 2 inputs x double buffer
                     + 2 * weight_bytes                 # resident weights/biases
                     + 2 * tb * CP * 4                  # output
                     + 2 * tb * PH * 4)                 # f32 accumulators

    else:
        raise ValueError(f"unknown pooling_mode: {pooling_mode}")

    # Explicit scoped-VMEM budget: ~2x the estimated pipelined footprint,
    # clamped to a v7x-safe ceiling (64 MiB physical -> stay <= 48 MiB) and
    # never below footprint + 1 MiB headroom.
    vmem_limit = int(max(min(48 << 20, max(16 << 20, 2 * footprint)),
                         footprint + (1 << 20)))

    out_padded = pl.pallas_call(
        kernel,
        out_shape=jax.ShapeDtypeStruct((B, CP), jnp.float32),
        grid_spec=pltpu.PrefetchScalarGridSpec(
            num_scalar_prefetch=0,
            grid=grid,
            in_specs=in_specs,
            out_specs=out_spec,
            scratch_shapes=scratch),
        compiler_params=pltpu.CompilerParams(
            dimension_semantics=dim_sem,
            vmem_limit_bytes=vmem_limit),
    )(*operands)

    return out_padded[:, :C]


# ----------------------------------------------------------------------------
# Pure-JAX reference + self-test
# ----------------------------------------------------------------------------
def _reference(input_0, input_1, w1, b1, w2, b2, pooling_mode='MEAN'):
    if pooling_mode == 'CLS':
        p0, p1 = input_0[:, 0, :], input_1[:, 0, :]
    else:
        p0, p1 = input_0.mean(axis=1), input_1.mean(axis=1)
    feats = jnp.concatenate([p0, p1, p0 * p1, p0 - p1], axis=-1)
    h = jnp.maximum(feats @ w1 + b1, 0.0)
    return h @ w2 + b2


if __name__ == "__main__":
    # Config consistent with the module: hidden_dim=32, ff_dim=64, num_classes=2
    B, L, H = 2, 8, 32
    FF, C = 64, 2

    key = jax.random.PRNGKey(0)
    k0, k1, k2, k3, k4, k5 = jax.random.split(key, 6)

    input_0 = jax.random.normal(k0, (B, L, H), dtype=jnp.float32)
    input_1 = jax.random.normal(k1, (B, L, H), dtype=jnp.float32)

    # nn.Linear weights are [out, in] in PyTorch; stored here pre-transposed [in, out].
    w1 = jax.random.normal(k2, (4 * H, FF), dtype=jnp.float32) * 0.05
    b1 = jax.random.normal(k3, (FF,), dtype=jnp.float32) * 0.01
    w2 = jax.random.normal(k4, (FF, C), dtype=jnp.float32) * 0.05
    b2 = jax.random.normal(k5, (C,), dtype=jnp.float32) * 0.01

    for mode in ('MEAN', 'CLS'):
        out = sequence_classification_head_dual(
            input_0, input_1, w1, b1, w2, b2, pooling_mode=mode)
        out = jax.block_until_ready(out)
        ref = _reference(input_0, input_1, w1, b1, w2, b2, pooling_mode=mode)
        assert out.shape == (B, C), (mode, out.shape)
        assert jnp.allclose(out, ref, atol=1e-4, rtol=1e-4), (mode, out, ref)

    print("KERNEL_OK")
</pallas_src>

<mosaic_0001>
module attributes {stable_mosaic.version = 11 : i64} {
  func.func @_head_kernel_mean(%arg0: i32, %arg1: i32, %arg2: memref<2x2x128xf32, #tpu.memory_space<vmem>>, %arg3: memref<2x2x128xf32, #tpu.memory_space<vmem>>, %arg4: memref<128x128xf32, #tpu.memory_space<vmem>>, %arg5: memref<1x128xf32, #tpu.memory_space<vmem>>, %arg6: memref<128x128xf32, #tpu.memory_space<vmem>>, %arg7: memref<1x128xf32, #tpu.memory_space<vmem>>, %arg8: memref<2x128xf32, #tpu.memory_space<vmem>>, %arg9: memref<2x128xf32, #tpu.memory_space<vmem>>, %arg10: memref<2x128xf32, #tpu.memory_space<vmem>>) attributes {dimension_semantics = [#tpu.dimension_semantics<parallel>, #tpu.dimension_semantics<arbitrary>], iteration_bounds = array<i64: 1, 1>, scalar_prefetch = 0 : i64, scratch_operands = 2 : i64, tpu.core_type = #tpu.core_type<tc>, window_params = [{transform_indices = @transform_0, window_bounds = array<i64: 2, 2, 128>}, {transform_indices = @transform_1, window_bounds = array<i64: 2, 2, 128>}, {pipeline_mode = #tpu.pipeline_mode<synchronous>, transform_indices = @transform_2, window_bounds = array<i64: 128, 128>}, {pipeline_mode = #tpu.pipeline_mode<synchronous>, transform_indices = @transform_3, window_bounds = array<i64: 1, 128>}, {pipeline_mode = #tpu.pipeline_mode<synchronous>, transform_indices = @transform_4, window_bounds = array<i64: 128, 128>}, {pipeline_mode = #tpu.pipeline_mode<synchronous>, transform_indices = @transform_5, window_bounds = array<i64: 1, 128>}, {transform_indices = @transform_6, window_bounds = array<i64: 2, 128>}]} {
    %c0_i32 = arith.constant 0 : i32
    %0 = arith.cmpi eq, %arg1, %c0_i32 : i32
    %1 = arith.extui %0 : i1 to i32
    %c0_i32_0 = arith.constant 0 : i32
    %2 = arith.cmpi ne, %1, %c0_i32_0 : i32
    scf.if %2 {
      %cst_17 = arith.constant 0.000000e+00 : f32
      %16 = vector.broadcast %cst_17 : f32 to vector<2x128xf32>
      %c0_18 = arith.constant 0 : index
      %c0_19 = arith.constant 0 : index
      %17 = vector.load %arg9[%c0_18, %c0_19] : memref<2x128xf32, #tpu.memory_space<vmem>>, vector<2x128xf32>
      tpu.vector_store %arg9[%c0_18, %c0_19], %16 {strides = array<i32>} : memref<2x128xf32, #tpu.memory_space<vmem>>, vector<2x128xf32>,
      %cst_20 = arith.constant 0.000000e+00 : f32
      %18 = vector.broadcast %cst_20 : f32 to vector<2x128xf32>
      %c0_21 = arith.constant 0 : index
      %c0_22 = arith.constant 0 : index
      %19 = vector.load %arg10[%c0_21, %c0_22] : memref<2x128xf32, #tpu.memory_space<vmem>>, vector<2x128xf32>
      tpu.vector_store %arg10[%c0_21, %c0_22], %18 {strides = array<i32>} : memref<2x128xf32, #tpu.memory_space<vmem>>, vector<2x128xf32>,
    } else {
    }
    %c0 = arith.constant 0 : index
    %c0_1 = arith.constant 0 : index
    %3 = vector.load %arg9[%c0, %c0_1] : memref<2x128xf32, #tpu.memory_space<vmem>>, vector<2x128xf32>
    %c0_2 = arith.constant 0 : index
    %c0_3 = arith.constant 0 : index
    %c0_4 = arith.constant 0 : index
    %4 = vector.load %arg2[%c0_2, %c0_3, %c0_4] : memref<2x2x128xf32, #tpu.memory_space<vmem>>, vector<2x2x128xf32>
    %cst = arith.constant dense<0.000000e+00> : vector<2x128xf32>
    %5 = vector.multi_reduction <add>, %4, %cst [1] : vector<2x2x128xf32> to vector<2x128xf32>
    %6 = arith.addf %3, %5 : vector<2x128xf32>
    %c0_5 = arith.constant 0 : index
    %c0_6 = arith.constant 0 : index
    %7 = vector.load %arg9[%c0_5, %c0_6] : memref<2x128xf32, #tpu.memory_space<vmem>>, vector<2x128xf32>
    tpu.vector_store %arg9[%c0_5, %c0_6], %6 {strides = array<i32>} : memref<2x128xf32, #tpu.memory_space<vmem>>, vector<2x128xf32>,
    %c0_7 = arith.constant 0 : index
    %c0_8 = arith.constant 0 : index
    %8 = vector.load %arg10[%c0_7, %c0_8] : memref<2x128xf32, #tpu.memory_space<vmem>>, vector<2x128xf32>
    %c0_9 = arith.constant 0 : index
    %c0_10 = arith.constant 0 : index
    %c0_11 = arith.constant 0 : index
    %9 = vector.load %arg3[%c0_9, %c0_10, %c0_11] : memref<2x2x128xf32, #tpu.memory_space<vmem>>, vector<2x2x128xf32>
    %cst_12 = arith.constant dense<0.000000e+00> : vector<2x128xf32>
    %10 = vector.multi_reduction <add>, %9, %cst_12 [1] : vector<2x2x128xf32> to vector<2x128xf32>
    %11 = arith.addf %8, %10 : vector<2x128xf32>
    %c0_13 = arith.constant 0 : index
    %c0_14 = arith.constant 0 : index
    %12 = vector.load %arg10[%c0_13, %c0_14] : memref<2x128xf32, #tpu.memory_space<vmem>>, vector<2x128xf32>
    tpu.vector_store %arg10[%c0_13, %c0_14], %11 {strides = array<i32>} : memref<2x128xf32, #tpu.memory_space<vmem>>, vector<2x128xf32>,
    %c0_i32_15 = arith.constant 0 : i32
    %13 = arith.cmpi eq, %arg1, %c0_i32_15 : i32
    %14 = arith.extui %13 : i1 to i32
    %c0_i32_16 = arith.constant 0 : i32
    %15 = arith.cmpi ne, %14, %c0_i32_16 : i32
    scf.if %15 {
      %c0_17 = arith.constant 0 : index
      %c0_18 = arith.constant 0 : index
      %16 = vector.load %arg9[%c0_17, %c0_18] : memref<2x128xf32, #tpu.memory_space<vmem>>, vector<2x128xf32>
      %17 = vector.extract_strided_slice %16 {offsets = [0, 0], sizes = [2, 32], strides = [1, 1]} : vector<2x128xf32> to vector<2x32xf32>
      %18 = vector.extract_strided_slice %16 {offsets = [0, 32], sizes = [2, 32], strides = [1, 1]} : vector<2x128xf32> to vector<2x32xf32>
      %19 = arith.addf %17, %18 : vector<2x32xf32>
      %20 = vector.extract_strided_slice %16 {offsets = [0, 64], sizes = [2, 32], strides = [1, 1]} : vector<2x128xf32> to vector<2x32xf32>
      %21 = arith.addf %19, %20 : vector<2x32xf32>
      %22 = vector.extract_strided_slice %16 {offsets = [0, 96], sizes = [2, 32], strides = [1, 1]} : vector<2x128xf32> to vector<2x32xf32>
      %23 = arith.addf %21, %22 : vector<2x32xf32>
      %cst_19 = arith.constant 1.250000e-01 : f32
      %24 = vector.broadcast %cst_19 : f32 to vector<2x32xf32>
      %25 = arith.mulf %23, %24 : vector<2x32xf32>
      %c0_20 = arith.constant 0 : index
      %c0_21 = arith.constant 0 : index
      %26 = vector.load %arg10[%c0_20, %c0_21] : memref<2x128xf32, #tpu.memory_space<vmem>>, vector<2x128xf32>
      %27 = vector.extract_strided_slice %26 {offsets = [0, 0], sizes = [2, 32], strides = [1, 1]} : vector<2x128xf32> to vector<2x32xf32>
      %28 = vector.extract_strided_slice %26 {offsets = [0, 32], sizes = [2, 32], strides = [1, 1]} : vector<2x128xf32> to vector<2x32xf32>
      %29 = arith.addf %27, %28 : vector<2x32xf32>
      %30 = vector.extract_strided_slice %26 {offsets = [0, 64], sizes = [2, 32], strides = [1, 1]} : vector<2x128xf32> to vector<2x32xf32>
      %31 = arith.addf %29, %30 : vector<2x32xf32>
      %32 = vector.extract_strided_slice %26 {offsets = [0, 96], sizes = [2, 32], strides = [1, 1]} : vector<2x128xf32> to vector<2x32xf32>
      %33 = arith.addf %31, %32 : vector<2x32xf32>
      %cst_22 = arith.constant 1.250000e-01 : f32
      %34 = vector.broadcast %cst_22 : f32 to vector<2x32xf32>
      %35 = arith.mulf %33, %34 : vector<2x32xf32>
      %36 = arith.mulf %25, %35 : vector<2x32xf32>
      %37 = arith.subf %25, %35 : vector<2x32xf32>
      %38 = tpu.concatenate %25, %35, %36, %37 in 1 : vector<2x32xf32>, vector<2x32xf32>, vector<2x32xf32>, vector<2x32xf32> -> vector<2x128xf32>
      %c0_23 = arith.constant 0 : index
      %c0_24 = arith.constant 0 : index
      %39 = vector.load %arg4[%c0_23, %c0_24] : memref<128x128xf32, #tpu.memory_space<vmem>>, vector<128x128xf32>
      %cst_25 = arith.constant dense<0.000000e+00> : vector<2x128xf32>
      %40 = tpu.matmul %38, %39, %cst_25 {dimension_numbers = #tpu.dot_dimension_numbers<[1], [0], [0], [1], [0, 0, 1, 1], [], []>} : vector<2x128xf32>, vector<128x128xf32>, vector<2x128xf32> -> vector<2x128xf32>
      %c0_26 = arith.constant 0 : index
      %c0_27 = arith.constant 0 : index
      %41 = vector.load %arg5[%c0_26, %c0_27] : memref<1x128xf32, #tpu.memory_space<vmem>>, vector<1x128xf32>
      %42 = vector.broadcast %41 : vector<1x128xf32> to vector<2x128xf32>
      %43 = arith.addf %40, %42 : vector<2x128xf32>
      %cst_28 = arith.constant 0.000000e+00 : f32
      %44 = vector.broadcast %cst_28 : f32 to vector<2x128xf32>
      %45 = arith.maximumf %43, %44 : vector<2x128xf32>
      %c0_29 = arith.constant 0 : index
      %c0_30 = arith.constant 0 : index
      %46 = vector.load %arg6[%c0_29, %c0_30] : memref<128x128xf32, #tpu.memory_space<vmem>>, vector<128x128xf32>
      %cst_31 = arith.constant dense<0.000000e+00> : vector<2x128xf32>
      %47 = tpu.matmul %45, %46, %cst_31 {dimension_numbers = #tpu.dot_dimension_numbers<[1], [0], [0], [1], [0, 0, 1, 1], [], []>} : vector<2x128xf32>, vector<128x128xf32>, vector<2x128xf32> -> vector<2x128xf32>
      %c0_32 = arith.constant 0 : index
      %c0_33 = arith.constant 0 : index
      %48 = vector.load %arg7[%c0_32, %c0_33] : memref<1x128xf32, #tpu.memory_space<vmem>>, vector<1x128xf32>
      %49 = vector.broadcast %48 : vector<1x128xf32> to vector<2x128xf32>
      %50 = arith.addf %47, %49 : vector<2x128xf32>
      %c0_34 = arith.constant 0 : index
      %c0_35 = arith.constant 0 : index
      %51 = vector.load %arg8[%c0_34, %c0_35] : memref<2x128xf32, #tpu.memory_space<vmem>>, vector<2x128xf32>
      tpu.vector_store %arg8[%c0_34, %c0_35], %50 {strides = array<i32>} : memref<2x128xf32, #tpu.memory_space<vmem>>, vector<2x128xf32>,
    } else {
    }
    return
  }
  func.func @transform_0(%arg0: i32, %arg1: i32) -> (i32, i32, i32) {
    %c0_i32 = arith.constant 0 : i32
    %c0_i32_0 = arith.constant 0 : i32
    return %arg0, %arg1, %c0_i32 : i32, i32, i32
  }
  func.func @transform_1(%arg0: i32, %arg1: i32) -> (i32, i32, i32) {
    %c0_i32 = arith.constant 0 : i32
    %c0_i32_0 = arith.constant 0 : i32
    return %arg0, %arg1, %c0_i32 : i32, i32, i32
  }
  func.func @transform_2(%arg0: i32, %arg1: i32) -> (i32, i32) {
    %c0_i32 = arith.constant 0 : i32
    %c0_i32_0 = arith.constant 0 : i32
    %c0_i32_1 = arith.constant 0 : i32
    return %c0_i32, %c0_i32_0 : i32, i32
  }
  func.func @transform_3(%arg0: i32, %arg1: i32) -> (i32, i32) {
    %c0_i32 = arith.constant 0 : i32
    %c0_i32_0 = arith.constant 0 : i32
    %c0_i32_1 = arith.constant 0 : i32
    return %c0_i32, %c0_i32_0 : i32, i32
  }
  func.func @transform_4(%arg0: i32, %arg1: i32) -> (i32, i32) {
    %c0_i32 = arith.constant 0 : i32
    %c0_i32_0 = arith.constant 0 : i32
    %c0_i32_1 = arith.constant 0 : i32
    return %c0_i32, %c0_i32_0 : i32, i32
  }
  func.func @transform_5(%arg0: i32, %arg1: i32) -> (i32, i32) {
    %c0_i32 = arith.constant 0 : i32
    %c0_i32_0 = arith.constant 0 : i32
    %c0_i32_1 = arith.constant 0 : i32
    return %c0_i32, %c0_i32_0 : i32, i32
  }
  func.func @transform_6(%arg0: i32, %arg1: i32) -> (i32, i32) {
    %c0_i32 = arith.constant 0 : i32
    %c0_i32_0 = arith.constant 0 : i32
    return %arg0, %c0_i32 : i32, i32
  }
}

</mosaic_0001>

<llo_original>
// kernel: tpu_custom_call.1
$region0: #{tpu_custom_call.1}
  #allocation0 [shape = 'u32[]', space=smem, size = 0x4, offset = 0x4, fixed_abs, tag = 'smem constant byte address 0x4 - core index']
  #allocation1 [shape = 'u32[144,128]{1,0:T(1,128)}', space=vmem, size = 0x12000, scoped, tag = 'internal scratch']
  #allocation2 [shape = 'f32[2,128]{1,0:T(2,128)}', space=vmem, size = 0x400, scoped, tag = 'scratch operand']
  #allocation3 [shape = 'f32[2,128]{1,0:T(2,128)}', space=vmem, size = 0x400, scoped, tag = 'scratch operand']
  %s0 = inlined_call_operand.hbm [shape: f32[2,2,128], index: 0, kind: input, shape index: {}]
  %s1 = inlined_call_operand.hbm [shape: f32[2,2,128], index: 1, kind: input, shape index: {}]
  %s2 = inlined_call_operand.hbm [shape: f32[128,128], index: 2, kind: input, shape index: {}]
  %s3 = inlined_call_operand.vmem [shape: f32[1,128], index: 3, kind: input, shape index: {}]
  %s4 = inlined_call_operand.hbm [shape: f32[128,128], index: 4, kind: input, shape index: {}]
  %s5 = inlined_call_operand.vmem [shape: f32[1,128], index: 5, kind: input, shape index: {}]
  %s6 = inlined_call_operand.hbm [shape: f32[2,128], index: 6, kind: output, shape index: {}]
  %s7 = sld [smem:[#allocation0]]
  $region58: #{tpu_custom_call.1} parent=0
    _
  %s9 = ssub.s32 1, %s7
  %s10 = scalar_select 0, %s9, %s7
  $region1: #{tpu_custom_call.1} parent=0
    #allocation4 [shape = 'u8[2048]{0}', space=vmem, size = 0x800, scoped, tag = 'input window, operand 0, single buffered']
    #allocation5 [shape = 's32[1]{0}', space=sflag, size = 0x4, scoped, tag = 'scoped memory for tpu_custom_call.1']
    #allocation6 [shape = 's32[1]{0}', space=sflag, size = 0x4, scoped, tag = 'scoped memory for tpu_custom_call.1']
    #allocation7 [shape = 'u8[2048]{0}', space=vmem, size = 0x800, scoped, tag = 'input window, operand 1, single buffered']
    #allocation8 [shape = 's32[1]{0}', space=sflag, size = 0x4, scoped, tag = 'scoped memory for tpu_custom_call.1']
    #allocation9 [shape = 'u8[65536]{0}', space=vmem, size = 0x10000, scoped, tag = 'input window, operand 2, single buffered']
    #allocation10 [shape = 'u8[65536]{0}', space=vmem, size = 0x10000, scoped, tag = 'input window, operand 4, single buffered']
    #allocation11 [shape = 's32[1]{0}', space=sflag, size = 0x4, scoped, tag = 'scoped memory for tpu_custom_call.1']
    #allocation12 [shape = 'u8[1024]{0}', space=vmem, size = 0x400, scoped, tag = 'output window, operand 0, single buffered']
    %11 = vsyncpa [#allocation5], 0
    %12 = vsyncpa [#allocation8], 0
    %13 = vsyncpa [#allocation11], 0
    %14 = vsyncpa [#allocation6], 0
    // Predicated region
    $region2: #{tpu_custom_call.1} parent=1 // pred_check
      _
    $region3: #{tpu_custom_call.1} parent=1 // pred_check_branch
      %16 = sbr.rel (0) target = $region5
    $region4: #{tpu_custom_call.1} parent=1 // pred_region
      %s18 = ssub.s32 64, 64
      %19 = vsyncadd [#allocation5], %s18
      %s20 = sshll.u32 [#allocation4], 4
      %s21 = int_to_ptr.vmem [resolvable:$true] %s20
      %26 = dma.hbm_to_vmem [thread:$0]  %s0, 64, %s21, [#allocation5], 32, 32, 2
    $region5: #{tpu_custom_call.1} parent=1 // pred_fallthru
      _
    // Predicated region
    $region6: #{tpu_custom_call.1} parent=1 // pred_check
      _
    $region7: #{tpu_custom_call.1} parent=1 // pred_check_branch
      %28 = sbr.rel (0) target = $region9
    $region8: #{tpu_custom_call.1} parent=1 // pred_region
      %s30 = ssub.s32 64, 64
      %31 = vsyncadd [#allocation8], %s30
      %s32 = sshll.u32 [#allocation7], 4
      %s33 = int_to_ptr.vmem [resolvable:$true] %s32
      %38 = dma.hbm_to_vmem [thread:$0]  %s1, 64, %s33, [#allocation8], 32, 32, 2
    $region9: #{tpu_custom_call.1} parent=1 // pred_fallthru
      _
    // Predicated region
    $region10: #{tpu_custom_call.1} parent=1 // pred_check
      _
    $region11: #{tpu_custom_call.1} parent=1 // pred_check_branch
      %40 = sbr.rel (0) target = $region13
    $region12: #{tpu_custom_call.1} parent=1 // pred_region
      %s42 = ssub.s32 2048, 2048
      %43 = vsyncadd [#allocation8], %s42
      %s44 = sshll.u32 [#allocation9], 4
      %s45 = int_to_ptr.vmem [resolvable:$true] %s44
      %50 = dma.hbm_to_vmem [thread:$0]  %s2, 2048, %s45, [#allocation8], 128, 128, 8
    $region13: #{tpu_custom_call.1} parent=1 // pred_fallthru
      _
    // Predicated region
    $region14: #{tpu_custom_call.1} parent=1 // pred_check
      _
    $region15: #{tpu_custom_call.1} parent=1 // pred_check_branch
      %52 = sbr.rel (0) target = $region17
    $region16: #{tpu_custom_call.1} parent=1 // pred_region
      _
    $region17: #{tpu_custom_call.1} parent=1 // pred_fallthru
      _
    // Predicated region
    $region18: #{tpu_custom_call.1} parent=1 // pred_check
      _
    $region19: #{tpu_custom_call.1} parent=1 // pred_check_branch
      %54 = sbr.rel (0) target = $region21
    $region20: #{tpu_custom_call.1} parent=1 // pred_region
      %s56 = ssub.s32 2048, 2048
      %57 = vsyncadd [#allocation11], %s56
      %s58 = sshll.u32 [#allocation10], 4
      %s59 = int_to_ptr.vmem [resolvable:$true] %s58
      %64 = dma.hbm_to_vmem [thread:$0]  %s4, 2048, %s59, [#allocation11], 128, 128, 8
    $region21: #{tpu_custom_call.1} parent=1 // pred_fallthru
      _
    // Predicated region
    $region22: #{tpu_custom_call.1} parent=1 // pred_check
      _
    $region23: #{tpu_custom_call.1} parent=1 // pred_check_branch
      %66 = sbr.rel (0) target = $region25
    $region24: #{tpu_custom_call.1} parent=1 // pred_region
      _
    $region25: #{tpu_custom_call.1} parent=1 // pred_fallthru
      _
    // Predicated region
    $region26: #{tpu_custom_call.1} parent=1 // pred_check
      _
    $region27: #{tpu_custom_call.1} parent=1 // pred_check_branch
      %68 = sbr.rel (0) target = $region29
    $region28: #{tpu_custom_call.1} parent=1 // pred_region
      %69 = dma.done [#allocation5], 64
    $region29: #{tpu_custom_call.1} parent=1 // pred_fallthru
      _
    // Predicated region
    $region30: #{tpu_custom_call.1} parent=1 // pred_check
      _
    $region31: #{tpu_custom_call.1} parent=1 // pred_check_branch
      %71 = sbr.rel (0) target = $region33
    $region32: #{tpu_custom_call.1} parent=1 // pred_region
      %72 = dma.done [#allocation8], 64
    $region33: #{tpu_custom_call.1} parent=1 // pred_fallthru
      _
    // Predicated region
    $region34: #{tpu_custom_call.1} parent=1 // pred_check
      _
    $region35: #{tpu_custom_call.1} parent=1 // pred_check_branch
      %74 = sbr.rel (0) target = $region37
    $region36: #{tpu_custom_call.1} parent=1 // pred_region
      %75 = dma.done [#allocation8], 2048
    $region37: #{tpu_custom_call.1} parent=1 // pred_fallthru
      _
    // Predicated region
    $region38: #{tpu_custom_call.1} parent=1 // pred_check
      _
    $region39: #{tpu_custom_call.1} parent=1 // pred_check_branch
      %77 = sbr.rel (0) target = $region41
    $region40: #{tpu_custom_call.1} parent=1 // pred_region
      %78 = dma.done [#allocation11], 2048
    $region41: #{tpu_custom_call.1} parent=1 // pred_fallthru
      _
    %p79 = scmp.eq.s32.totalorder 0, 0
    // Predicated region
    $region42: #{tpu_custom_call.1} parent=1 // pred_check
      %p80 = pneg %p79
    $region43: #{tpu_custom_call.1} parent=1 // pred_check_branch
      %82 = sbr.rel (%p80) target = $region45
    $region44: #{tpu_custom_call.1} parent=1 // pred_region
      %83 = vst [vmem:[#allocation2] sm:$0x3] 0.0
      %84 = vst [vmem:[#allocation3] sm:$0x3] 0.0
    $region45: #{tpu_custom_call.1} parent=1 // pred_fallthru
      _
    %v85 = vld [vmem:[#allocation2] sm:$0x3]
    %v86 = vld [vmem:[#allocation4] sm:$0x3]
    %v87 = vld [vmem:[#allocation4 + $0x2] sm:$0x3]
    %vm88 = vcmask 1041408
    %v89 = vsel %vm88, %v86, 0.0
    %v90 = vrot.slane %v89, 4
    %v91 = vadd.f32 %v89, %v90
    %v92 = vrot.slane %v91, 2
    %v93 = vadd.f32 %v91, %v92
    %v94 = vrot.slane %v93, 1
    %v95 = vadd.f32 %v93, %v94
    %v96 = vsel %vm88, %v87, 0.0
    %v97 = vrot.slane %v96, 4
    %v98 = vadd.f32 %v96, %v97
    %v99 = vrot.slane %v98, 2
    %v100 = vadd.f32 %v98, %v99
    %v101 = vrot.slane %v100, 1
    %v102 = vadd.f32 %v100, %v101
    %vm105 = vcmask 1041409
    %v106 = vsel %vm105, %v102, %v95
    %v108 = vadd.f32 %v85, %v106
    %109 = vst [vmem:[#allocation2] sm:$0x3] %v108
    %v110 = vld [vmem:[#allocation3] sm:$0x3]
    %v111 = vld [vmem:[#allocation7] sm:$0x3]
    %v112 = vld [vmem:[#allocation7 + $0x2] sm:$0x3]
    %v113 = vsel %vm88, %v111, 0.0
    %v114 = vrot.slane %v113, 4
    %v115 = vadd.f32 %v113, %v114
    %v116 = vrot.slane %v115, 2
    %v117 = vadd.f32 %v115, %v116
    %v118 = vrot.slane %v117, 1
    %v119 = vadd.f32 %v117, %v118
    %v120 = vsel %vm88, %v112, 0.0
    %v121 = vrot.slane %v120, 4
    %v122 = vadd.f32 %v120, %v121
    %v123 = vrot.slane %v122, 2
    %v124 = vadd.f32 %v122, %v123
    %v125 = vrot.slane %v124, 1
    %v126 = vadd.f32 %v124, %v125
    %v129 = vsel %vm105, %v126, %v119
    %v131 = vadd.f32 %v110, %v129
    %132 = vst [vmem:[#allocation3] sm:$0x3] %v131
    // Predicated region
    $region46: #{tpu_custom_call.1} parent=1 // pred_check
      %p133 = pneg %p79
    $region47: #{tpu_custom_call.1} parent=1 // pred_check_branch
      %135 = sbr.rel (%p133) target = $region49
    $region48: #{tpu_custom_call.1} parent=1 // pred_region
      %v136 = vld [vmem:[#allocation2] sm:$0x3]
      %138 = vrot.lane.b32.xlu0 %v136, 96
      %v139 = vpop.permute.xlu0 %138
      %v141 = vadd.f32 %v136, %v139
      %142 = vrot.lane.b32.xlu0 %v136, 64
      %v143 = vpop.permute.xlu0 %142
      %v145 = vadd.f32 %v141, %v143
      %146 = vrot.lane.b32.xlu0 %v136, 32
      %v147 = vpop.permute.xlu0 %146
      %v149 = vadd.f32 %v145, %v147
      %v150 = vmul.f32 %v149, 0.125
      %v151 = vld [vmem:[#allocation3] sm:$0x3]
      %153 = vrot.lane.b32.xlu0 %v151, 96
      %v154 = vpop.permute.xlu0 %153
      %v156 = vadd.f32 %v151, %v154
      %157 = vrot.lane.b32.xlu0 %v151, 64
      %v158 = vpop.permute.xlu0 %157
      %v160 = vadd.f32 %v156, %v158
      %161 = vrot.lane.b32.xlu0 %v151, 32
      %v162 = vpop.permute.xlu0 %161
      %v164 = vadd.f32 %v160, %v162
      %v165 = vmul.f32 %v164, 0.125
      %v166 = vmul.f32 %v150, %v165
      %v167 = vsub.f32 %v150, %v165
      %169 = vrot.lane.b32.xlu0 %v165, 32
      %v170 = vpop.permute.xlu0 %169
      %173 = vrot.lane.b32.xlu0 %v166, 64
      %v174 = vpop.permute.xlu0 %173
      %177 = vrot.lane.b32.xlu0 %v167, 96
      %v178 = vpop.permute.xlu0 %177
      %vm180 = vcmask 261120
      %v181 = vsel %vm180, %v150, %v170
      %vm182 = vcmask 523264
      %v183 = vsel %vm182, %v181, %v174
      %vm184 = vcmask 785408
      %v185 = vsel %vm184, %v183, %v178
      %v186 = vld [vmem:[#allocation9] sm:$0xff]
      %v187 = vld [vmem:[#allocation9 + $0x8] sm:$0xff]
      %v188 = vld [vmem:[#allocation9 + $0x10] sm:$0xff]
      %v189 = vld [vmem:[#allocation9 + $0x18] sm:$0xff]
      %v190 = vld [vmem:[#allocation9 + $0x20] sm:$0xff]
      %v191 = vld [vmem:[#allocation9 + $0x28] sm:$0xff]
      %v192 = vld [vmem:[#allocation9 + $0x30] sm:$0xff]
      %v193 = vld [vmem:[#allocation9 + $0x38] sm:$0xff]
      %v194 = vld [vmem:[#allocation9 + $0x40] sm:$0xff]
      %v195 = vld [vmem:[#allocation9 + $0x48] sm:$0xff]
      %v196 = vld [vmem:[#allocation9 + $0x50] sm:$0xff]
      %v197 = vld [vmem:[#allocation9 + $0x58] sm:$0xff]
      %v198 = vld [vmem:[#allocation9 + $0x60] sm:$0xff]
      %v199 = vld [vmem:[#allocation9 + $0x68] sm:$0xff]
      %v200 = vld [vmem:[#allocation9 + $0x70] sm:$0xff]
      %v201 = vld [vmem:[#allocation9 + $0x78] sm:$0xff]
      %v202 = vld [vmem:[%s3] sm:$0x1]
      %v204 = vlaneseq
      %v205 = vshrl.u32 %v204, 7
      %v206 = vsub.s32 0, %v205
      %v207 = vrot.slane %v202, %v206
      %209 = vmatprep.subr.mxu0 0.0
      %210 = vmatpush1.msra.mxu0 %v186
      %211 = vmatprep.subr.mxu0 0.0
      %212 = vmatpush1.msra.mxu0 %v187
      %213 = vmatprep.subr.mxu0 0.0
      %214 = vmatpush1.msra.mxu0 %v188
      %215 = vmatprep.subr.mxu0 0.0
      %216 = vmatpush1.msra.mxu0 %v189
      %217 = vmatprep.subr.mxu0 0.0
      %218 = vmatpush1.msra.mxu0 %v190
      %219 = vmatprep.subr.mxu0 0.0
      %220 = vmatpush1.msra.mxu0 %v191
      %221 = vmatprep.subr.mxu0 0.0
      %222 = vmatpush1.msra.mxu0 %v192
      %223 = vmatprep.subr.mxu0 0.0
      %224 = vmatpush1.msra.mxu0 %v193
      %225 = vmatprep.subr.mxu0 0.0
      %226 = vmatpush1.msra.mxu0 %v194
      %227 = vmatprep.subr.mxu0 0.0
      %228 = vmatpush1.msra.mxu0 %v195
      %229 = vmatprep.subr.mxu0 0.0
      %230 = vmatpush1.msra.mxu0 %v196
      %231 = vmatprep.subr.mxu0 0.0
      %232 = vmatpush1.msra.mxu0 %v197
      %233 = vmatprep.subr.mxu0 0.0
      %234 = vmatpush1.msra.mxu0 %v198
      %235 = vmatprep.subr.mxu0 0.0
      %236 = vmatpush1.msra.mxu0 %v199
      %237 = vmatprep.subr.mxu0 0.0
      %238 = vmatpush1.msra.mxu0 %v200
      %239 = vmatprep.subr.mxu0 0.0
      %240 = vmatpush1.msra.mxu0 %v201
      %241 = vmatprep.subr.mxu0 0.0
      %242 = vmatpush1.msra.mxu0 0.0
      %243 = vmatprep.subr.mxu0 0.0
      %244 = vmatpush1.msra.mxu0 0.0
      %245 = vmatprep.subr.mxu0 0.0
      %246 = vmatpush1.msra.mxu0 0.0
      %247 = vmatprep.subr.mxu0 0.0
      %248 = vmatpush1.msra.mxu0 0.0
      %249 = vmatprep.subr.mxu0 0.0
      %250 = vmatpush1.msra.mxu0 0.0
      %251 = vmatprep.subr.mxu0 0.0
      %252 = vmatpush1.msra.mxu0 0.0
      %253 = vmatprep.subr.mxu0 0.0
      %254 = vmatpush1.msra.mxu0 0.0
      %255 = vmatprep.subr.mxu0 0.0
      %256 = vmatpush1.msra.mxu0 0.0
      %257 = vmatprep.subr.mxu0 0.0
      %258 = vmatpush1.msra.mxu0 0.0
      %259 = vmatprep.subr.mxu0 0.0
      %260 = vmatpush1.msra.mxu0 0.0
      %261 = vmatprep.subr.mxu0 0.0
      %262 = vmatpush1.msra.mxu0 0.0
      %263 = vmatprep.subr.mxu0 0.0
      %264 = vmatpush1.msra.mxu0 0.0
      %265 = vmatprep.subr.mxu0 0.0
      %266 = vmatpush1.msra.mxu0 0.0
      %267 = vmatprep.subr.mxu0 0.0
      %268 = vmatpush1.msra.mxu0 0.0
      %269 = vmatprep.subr.mxu0 0.0
      %270 = vmatpush1.msra.mxu0 0.0
      %271 = vmatprep.subr.mxu0 0.0
      %272 = vmatpush1.msra.mxu0 0.0
      %273 = vmatprep.mubr.f32.mxu0 0.0
      %274 = vmatmul.mubr.f32.gmra.mrb[0].mxu0 %v185
      %v275 = vpop.f32.mrb[0].mxu0
      %v276 = vadd.f32 %v207, %v275
      %v277 = vpop.f32.mrb[0].mxu0
      %278 = vdwg.mxu0
      %v279 = vmax.f32 %v276, 0.0
      %v280 = vld [vmem:[#allocation10] sm:$0xff]
      %v281 = vld [vmem:[#allocation10 + $0x8] sm:$0xff]
      %v282 = vld [vmem:[#allocation10 + $0x10] sm:$0xff]
      %v283 = vld [vmem:[#allocation10 + $0x18] sm:$0xff]
      %v284 = vld [vmem:[#allocation10 + $0x20] sm:$0xff]
      %v285 = vld [vmem:[#allocation10 + $0x28] sm:$0xff]
      %v286 = vld [vmem:[#allocation10 + $0x30] sm:$0xff]
      %v287 = vld [vmem:[#allocation10 + $0x38] sm:$0xff]
      %v288 = vld [vmem:[#allocation10 + $0x40] sm:$0xff]
      %v289 = vld [vmem:[#allocation10 + $0x48] sm:$0xff]
      %v290 = vld [vmem:[#allocation10 + $0x50] sm:$0xff]
      %v291 = vld [vmem:[#allocation10 + $0x58] sm:$0xff]
      %v292 = vld [vmem:[#allocation10 + $0x60] sm:$0xff]
      %v293 = vld [vmem:[#allocation10 + $0x68] sm:$0xff]
      %v294 = vld [vmem:[#allocation10 + $0x70] sm:$0xff]
      %v295 = vld [vmem:[#allocation10 + $0x78] sm:$0xff]
      %v296 = vld [vmem:[%s5] sm:$0x1]
      %v298 = vlaneseq
      %v299 = vshrl.u32 %v298, 7
      %v300 = vsub.s32 0, %v299
      %v301 = vrot.slane %v296, %v300
      %303 = vmatprep.subr.mxu0 0.0
      %304 = vmatpush1.msra.mxu0 %v280
      %305 = vmatprep.subr.mxu0 0.0
      %306 = vmatpush1.msra.mxu0 %v281
      %307 = vmatprep.subr.mxu0 0.0
      %308 = vmatpush1.msra.mxu0 %v282
      %309 = vmatprep.subr.mxu0 0.0
      %310 = vmatpush1.msra.mxu0 %v283
      %311 = vmatprep.subr.mxu0 0.0
      %312 = vmatpush1.msra.mxu0 %v284
      %313 = vmatprep.subr.mxu0 0.0
      %314 = vmatpush1.msra.mxu0 %v285
      %315 = vmatprep.subr.mxu0 0.0
      %316 = vmatpush1.msra.mxu0 %v286
      %317 = vmatprep.subr.mxu0 0.0
      %318 = vmatpush1.msra.mxu0 %v287
      %319 = vmatprep.subr.mxu0 0.0
      %320 = vmatpush1.msra.mxu0 %v288
      %321 = vmatprep.subr.mxu0 0.0
      %322 = vmatpush1.msra.mxu0 %v289
      %323 = vmatprep.subr.mxu0 0.0
      %324 = vmatpush1.msra.mxu0 %v290
      %325 = vmatprep.subr.mxu0 0.0
      %326 = vmatpush1.msra.mxu0 %v291
      %327 = vmatprep.subr.mxu0 0.0
      %328 = vmatpush1.msra.mxu0 %v292
      %329 = vmatprep.subr.mxu0 0.0
      %330 = vmatpush1.msra.mxu0 %v293
      %331 = vmatprep.subr.mxu0 0.0
      %332 = vmatpush1.msra.mxu0 %v294
      %333 = vmatprep.subr.mxu0 0.0
      %334 = vmatpush1.msra.mxu0 %v295
      %335 = vmatprep.subr.mxu0 0.0
      %336 = vmatpush1.msra.mxu0 0.0
      %337 = vmatprep.subr.mxu0 0.0
      %338 = vmatpush1.msra.mxu0 0.0
      %339 = vmatprep.subr.mxu0 0.0
      %340 = vmatpush1.msra.mxu0 0.0
      %341 = vmatprep.subr.mxu0 0.0
      %342 = vmatpush1.msra.mxu0 0.0
      %343 = vmatprep.subr.mxu0 0.0
      %344 = vmatpush1.msra.mxu0 0.0
      %345 = vmatprep.subr.mxu0 0.0
      %346 = vmatpush1.msra.mxu0 0.0
      %347 = vmatprep.subr.mxu0 0.0
      %348 = vmatpush1.msra.mxu0 0.0
      %349 = vmatprep.subr.mxu0 0.0
      %350 = vmatpush1.msra.mxu0 0.0
      %351 = vmatprep.subr.mxu0 0.0
      %352 = vmatpush1.msra.mxu0 0.0
      %353 = vmatprep.subr.mxu0 0.0
      %354 = vmatpush1.msra.mxu0 0.0
      %355 = vmatprep.subr.mxu0 0.0
      %356 = vmatpush1.msra.mxu0 0.0
      %357 = vmatprep.subr.mxu0 0.0
      %358 = vmatpush1.msra.mxu0 0.0
      %359 = vmatprep.subr.mxu0 0.0
      %360 = vmatpush1.msra.mxu0 0.0
      %361 = vmatprep.subr.mxu0 0.0
      %362 = vmatpush1.msra.mxu0 0.0
      %363 = vmatprep.subr.mxu0 0.0
      %364 = vmatpush1.msra.mxu0 0.0
      %365 = vmatprep.subr.mxu0 0.0
      %366 = vmatpush1.msra.mxu0 0.0
      %367 = vmatprep.mubr.f32.mxu0 0.0
      %368 = vmatmul.mubr.f32.gmra.mrb[0].mxu0 %v279
      %v369 = vpop.f32.mrb[0].mxu0
      %v370 = vadd.f32 %v301, %v369
      %v371 = vpop.f32.mrb[0].mxu0
      %372 = vdwg.mxu0
      %373 = vst [vmem:[#allocation12] sm:$0x3] %v370
    $region49: #{tpu_custom_call.1} parent=1 // pred_fallthru
      _
    // Predicated region
    $region50: #{tpu_custom_call.1} parent=1 // pred_check
      _
    $region51: #{tpu_custom_call.1} parent=1 // pred_check_branch
      %375 = sbr.rel (0) target = $region53
    $region52: #{tpu_custom_call.1} parent=1 // pred_region
      %s377 = ssub.s32 32, 32
      %378 = vsyncadd [#allocation6], %s377
      %s380 = sshll.u32 [#allocation12], 4
      %s381 = int_to_ptr.vmem [resolvable:$true] %s380
      %383 = dma.vmem_to_hbm [thread:$0]  %s381, 32, %s6, [#allocation6]
    $region53: #{tpu_custom_call.1} parent=1 // pred_fallthru
      _
    // Predicated region
    $region54: #{tpu_custom_call.1} parent=1 // pred_check
      _
    $region55: #{tpu_custom_call.1} parent=1 // pred_check_branch
      %385 = sbr.rel (0) target = $region57
    $region56: #{tpu_custom_call.1} parent=1 // pred_region
      %386 = dma.done [#allocation6], 32
    $region57: #{tpu_custom_call.1} parent=1 // pred_fallthru
      _
    %387 = vsyncpa [#allocation5], 1
    %388 = vsyncpa [#allocation8], 1
    %389 = vsyncpa [#allocation11], 1
    %390 = vsyncpa [#allocation6], 1

</llo_original>
